<compile_context>
chip_gen: v7x
topology: tpu7x:2x2x1
jax: 0.10.0
libtpu: 0.0.40
codegen_flags: <defaults>
</compile_context>

<pallas_src>
import functools

import jax
import jax.numpy as jnp
from jax.experimental import pallas as pl
from jax.experimental.pallas import tpu as pltpu

BN_EPS = 1e-5


def _bn_relu(h, gamma, beta):
    # Training-mode BatchNorm1d + ReLU, folded into a centered scale/shift.
    mean = jnp.mean(h, axis=0, keepdims=True)
    hc = h - mean                                    # reused for var and norm
    var = jnp.mean(hc * hc, axis=0, keepdims=True)
    scale = gamma * jax.lax.rsqrt(var + BN_EPS)      # rsqrt -> EUP slot
    return jnp.maximum(hc * scale + beta, 0.0)


def decoder_kernel(x_ref, w1_ref, w2_ref, w3_ref, w4_ref, w5_ref, w6_ref,
                   vec_ref, out_ref, *, bn_dims, out_pad):
    # vec_ref row layout: 0..4 = gamma of BN layers 1..5,
    #                     5..9 = beta  of BN layers 1..5,
    #                     10   = bias of the final Linear (zero-padded).
    h = x_ref[...]
    w_refs = (w1_ref, w2_ref, w3_ref, w4_ref, w5_ref)
    for i, (w_ref, d) in enumerate(zip(w_refs, bn_dims)):
        # Pre-BN linear biases are dropped: exactly cancelled by the mean
        # subtraction of training-mode BatchNorm.
        h = jnp.dot(h, w_ref[...], preferred_element_type=jnp.float32)
        gamma = vec_ref[i:i + 1, :d]                 # static slices, no copy
        beta = vec_ref[5 + i:6 + i, :d]
        h = _bn_relu(h, gamma, beta)
    out = jnp.dot(h, w6_ref[...], preferred_element_type=jnp.float32)
    out_ref[...] = (out + vec_ref[10:11, :out_pad]).astype(out_ref.dtype)


def init_decoder_params(key, inp_dim, out_dim, hidden_dim, z_dim):
    """Module-semantics params (Linear weights stored transposed [in, out],
    all biases present, BN gamma=1 / beta=0 as in PyTorch defaults)."""
    dims = [
        (z_dim + inp_dim, hidden_dim),
        (hidden_dim, hidden_dim),
        (hidden_dim, hidden_dim),
        (hidden_dim, hidden_dim),
        (hidden_dim, 256),
        (256, out_dim),
    ]
    params = []
    for i, (d_in, d_out) in enumerate(dims):
        key, kw, kb = jax.random.split(key, 3)
        bound = 1.0 / jnp.sqrt(jnp.float32(d_in))
        w = jax.random.uniform(kw, (d_in, d_out), jnp.float32, -bound, bound)
        b = jax.random.uniform(kb, (1, d_out), jnp.float32, -bound, bound)
        params.extend([w, b])
        if i < 5:  # first 5 linears are followed by BatchNorm1d + ReLU
            params.append(jnp.ones((1, d_out), jnp.float32))   # gamma
            params.append(jnp.zeros((1, d_out), jnp.float32))  # beta
    return params


def _round_up(n, m=128):
    return ((n + m - 1) // m) * m


def pack_decoder_params(params):
    """Pad weights to 128-multiples and pack the small per-layer vectors.

    Biases of Linear layers 1-5 are dropped (cancelled by training-mode BN).
    Padded weight rows/cols and beta entries are zero, so padded lanes stay
    exactly zero through every layer.
    """
    p = list(params)
    ws, gammas, betas = [], [], []
    for i in range(5):
        w, _b, g, be = p[4 * i:4 * i + 4]
        ws.append(w)
        gammas.append(g)
        betas.append(be)
    w6, b6 = p[20], p[21]

    in_pad = _round_up(ws[0].shape[0])
    bn_pads = [_round_up(w.shape[1]) for w in ws]
    out_pad = _round_up(w6.shape[1])

    padded_ws = []
    d_in = in_pad
    for w, d_out in zip(ws, bn_pads):
        wp = jnp.zeros((d_in, d_out), jnp.float32)
        wp = wp.at[:w.shape[0], :w.shape[1]].set(w)
        padded_ws.append(wp)
        d_in = d_out
    w6p = jnp.zeros((d_in, out_pad), jnp.float32)
    w6p = w6p.at[:w6.shape[0], :w6.shape[1]].set(w6)
    padded_ws.append(w6p)

    vw = max(max(bn_pads), out_pad)
    vecs = jnp.zeros((11, vw), jnp.float32)
    for i in range(5):
        vecs = vecs.at[i, :gammas[i].shape[1]].set(gammas[i][0])
        vecs = vecs.at[5 + i, :betas[i].shape[1]].set(betas[i][0])
    vecs = vecs.at[10, :b6.shape[1]].set(b6[0])
    return tuple(padded_ws), vecs


@functools.partial(jax.jit, static_argnames=("out_dim",))
def decoder_forward(x, weights, vecs, out_dim):
    batch = x.shape[0]
    in_pad = weights[0].shape[0]
    bn_dims = tuple(w.shape[1] for w in weights[:5])
    out_pad = weights[5].shape[1]

    # Zero-pad input features to the lane-aligned width (padded lanes stay 0).
    x_pad = jnp.pad(x, ((0, 0), (0, in_pad - x.shape[1])))

    flops = 2 * batch * sum(w.shape[0] * w.shape[1] for w in weights)
    bytes_accessed = 4 * (x_pad.size + sum(w.size for w in weights)
                          + vecs.size + batch * out_pad)
    vmem_limit = int(min(64 * 1024 * 1024,
                         max(4 * 1024 * 1024, 4 * bytes_accessed)))

    vmem = pl.BlockSpec(memory_space=pltpu.MemorySpace.VMEM)
    out_padded = pl.pallas_call(
        functools.partial(decoder_kernel, bn_dims=bn_dims, out_pad=out_pad),
        out_shape=jax.ShapeDtypeStruct((batch, out_pad), jnp.float32),
        in_specs=[vmem] * 8,
        out_specs=vmem,
        compiler_params=pltpu.CompilerParams(vmem_limit_bytes=vmem_limit),
        cost_estimate=pl.CostEstimate(
            flops=flops,
            transcendentals=sum(bn_dims),       # one rsqrt lane per BN feature
            bytes_accessed=int(bytes_accessed)),
    )(x_pad, *weights, vecs)
    return out_padded[:, :out_dim]


def decoder_reference(x, params):
    """Pure-JAX reference with full module semantics (all biases kept)."""
    p = list(params)
    h = x
    for i in range(5):
        w, b, g, be = p[4 * i:4 * i + 4]
        h = h @ w + b
        mean = jnp.mean(h, axis=0, keepdims=True)
        var = jnp.mean((h - mean) ** 2, axis=0, keepdims=True)
        h = jnp.maximum((h - mean) * jax.lax.rsqrt(var + BN_EPS) * g + be, 0.0)
    return h @ p[20] + p[21]


if __name__ == "__main__":
    # Small shapes consistent with the module's forward.
    inp_dim, z_dim, hidden_dim, out_dim = 16, 16, 32, 8
    batch = 8

    key = jax.random.PRNGKey(0)
    k_params, k_x = jax.random.split(key)
    params = init_decoder_params(k_params, inp_dim, out_dim, hidden_dim, z_dim)
    x = jax.random.normal(k_x, (batch, z_dim + inp_dim), jnp.float32)

    weights, vecs = pack_decoder_params(params)
    out = decoder_forward(x, weights, vecs, out_dim=out_dim)
    out = jax.block_until_ready(out)

    ref = decoder_reference(x, params)
    assert out.shape == (batch, out_dim)
    assert jnp.allclose(out, ref, atol=5e-4, rtol=5e-4), float(
        jnp.max(jnp.abs(out - ref)))

    print("KERNEL_OK")
</pallas_src>

<mosaic_0001>
module attributes {stable_mosaic.version = 11 : i64} {
  func.func @decoder_kernel(%arg0: memref<8x128xf32, #tpu.memory_space<vmem>>, %arg1: memref<128x128xf32, #tpu.memory_space<vmem>>, %arg2: memref<128x128xf32, #tpu.memory_space<vmem>>, %arg3: memref<128x128xf32, #tpu.memory_space<vmem>>, %arg4: memref<128x128xf32, #tpu.memory_space<vmem>>, %arg5: memref<128x256xf32, #tpu.memory_space<vmem>>, %arg6: memref<256x128xf32, #tpu.memory_space<vmem>>, %arg7: memref<11x256xf32, #tpu.memory_space<vmem>>, %arg8: memref<8x128xf32, #tpu.memory_space<vmem>>) attributes {dimension_semantics = [], scalar_prefetch = 0 : i64, scratch_operands = 0 : i64, tpu.core_type = #tpu.core_type<tc>} {
    %c0 = arith.constant 0 : index
    %c0_0 = arith.constant 0 : index
    %0 = vector.load %arg0[%c0, %c0_0] : memref<8x128xf32, #tpu.memory_space<vmem>>, vector<8x128xf32>
    %c0_1 = arith.constant 0 : index
    %c0_2 = arith.constant 0 : index
    %1 = vector.load %arg1[%c0_1, %c0_2] : memref<128x128xf32, #tpu.memory_space<vmem>>, vector<128x128xf32>
    %cst = arith.constant dense<0.000000e+00> : vector<8x128xf32>
    %2 = tpu.matmul %0, %1, %cst {dimension_numbers = #tpu.dot_dimension_numbers<[1], [0], [0], [1], [0, 0, 1, 1], [], []>} : vector<8x128xf32>, vector<128x128xf32>, vector<8x128xf32> -> vector<8x128xf32>
    %c0_3 = arith.constant 0 : index
    %c0_4 = arith.constant 0 : index
    %3 = vector.load %arg7[%c0_3, %c0_4] : memref<11x256xf32, #tpu.memory_space<vmem>>, vector<1x128xf32>
    %c5 = arith.constant 5 : index
    %c0_5 = arith.constant 0 : index
    %4 = vector.load %arg7[%c5, %c0_5] : memref<11x256xf32, #tpu.memory_space<vmem>>, vector<1x128xf32>
    %cst_6 = arith.constant dense<0.000000e+00> : vector<128xf32>
    %5 = vector.multi_reduction <add>, %2, %cst_6 [0] : vector<8x128xf32> to vector<128xf32>
    %6 = vector.shape_cast %5 : vector<128xf32> to vector<1x128xf32>
    %cst_7 = arith.constant 8.000000e+00 : f32
    %7 = vector.broadcast %cst_7 : f32 to vector<1x128xf32>
    %8 = arith.divf %6, %7 : vector<1x128xf32>
    %9 = vector.broadcast %8 : vector<1x128xf32> to vector<8x128xf32>
    %10 = arith.subf %2, %9 : vector<8x128xf32>
    %11 = arith.mulf %10, %10 : vector<8x128xf32>
    %cst_8 = arith.constant dense<0.000000e+00> : vector<128xf32>
    %12 = vector.multi_reduction <add>, %11, %cst_8 [0] : vector<8x128xf32> to vector<128xf32>
    %13 = vector.shape_cast %12 : vector<128xf32> to vector<1x128xf32>
    %cst_9 = arith.constant 8.000000e+00 : f32
    %14 = vector.broadcast %cst_9 : f32 to vector<1x128xf32>
    %15 = arith.divf %13, %14 : vector<1x128xf32>
    %cst_10 = arith.constant 9.99999974E-6 : f32
    %16 = vector.broadcast %cst_10 : f32 to vector<1x128xf32>
    %17 = arith.addf %15, %16 : vector<1x128xf32>
    %18 = math.rsqrt %17 : vector<1x128xf32>
    %19 = arith.mulf %3, %18 : vector<1x128xf32>
    %20 = vector.broadcast %19 : vector<1x128xf32> to vector<8x128xf32>
    %21 = arith.mulf %10, %20 : vector<8x128xf32>
    %22 = vector.broadcast %4 : vector<1x128xf32> to vector<8x128xf32>
    %23 = arith.addf %21, %22 : vector<8x128xf32>
    %cst_11 = arith.constant 0.000000e+00 : f32
    %24 = vector.broadcast %cst_11 : f32 to vector<8x128xf32>
    %25 = arith.maximumf %23, %24 : vector<8x128xf32>
    %c0_12 = arith.constant 0 : index
    %c0_13 = arith.constant 0 : index
    %26 = vector.load %arg2[%c0_12, %c0_13] : memref<128x128xf32, #tpu.memory_space<vmem>>, vector<128x128xf32>
    %cst_14 = arith.constant dense<0.000000e+00> : vector<8x128xf32>
    %27 = tpu.matmul %25, %26, %cst_14 {dimension_numbers = #tpu.dot_dimension_numbers<[1], [0], [0], [1], [0, 0, 1, 1], [], []>} : vector<8x128xf32>, vector<128x128xf32>, vector<8x128xf32> -> vector<8x128xf32>
    %c1 = arith.constant 1 : index
    %c0_15 = arith.constant 0 : index
    %28 = vector.load %arg7[%c1, %c0_15] : memref<11x256xf32, #tpu.memory_space<vmem>>, vector<1x128xf32>
    %c6 = arith.constant 6 : index
    %c0_16 = arith.constant 0 : index
    %29 = vector.load %arg7[%c6, %c0_16] : memref<11x256xf32, #tpu.memory_space<vmem>>, vector<1x128xf32>
    %cst_17 = arith.constant dense<0.000000e+00> : vector<128xf32>
    %30 = vector.multi_reduction <add>, %27, %cst_17 [0] : vector<8x128xf32> to vector<128xf32>
    %31 = vector.shape_cast %30 : vector<128xf32> to vector<1x128xf32>
    %cst_18 = arith.constant 8.000000e+00 : f32
    %32 = vector.broadcast %cst_18 : f32 to vector<1x128xf32>
    %33 = arith.divf %31, %32 : vector<1x128xf32>
    %34 = vector.broadcast %33 : vector<1x128xf32> to vector<8x128xf32>
    %35 = arith.subf %27, %34 : vector<8x128xf32>
    %36 = arith.mulf %35, %35 : vector<8x128xf32>
    %cst_19 = arith.constant dense<0.000000e+00> : vector<128xf32>
    %37 = vector.multi_reduction <add>, %36, %cst_19 [0] : vector<8x128xf32> to vector<128xf32>
    %38 = vector.shape_cast %37 : vector<128xf32> to vector<1x128xf32>
    %cst_20 = arith.constant 8.000000e+00 : f32
    %39 = vector.broadcast %cst_20 : f32 to vector<1x128xf32>
    %40 = arith.divf %38, %39 : vector<1x128xf32>
    %cst_21 = arith.constant 9.99999974E-6 : f32
    %41 = vector.broadcast %cst_21 : f32 to vector<1x128xf32>
    %42 = arith.addf %40, %41 : vector<1x128xf32>
    %43 = math.rsqrt %42 : vector<1x128xf32>
    %44 = arith.mulf %28, %43 : vector<1x128xf32>
    %45 = vector.broadcast %44 : vector<1x128xf32> to vector<8x128xf32>
    %46 = arith.mulf %35, %45 : vector<8x128xf32>
    %47 = vector.broadcast %29 : vector<1x128xf32> to vector<8x128xf32>
    %48 = arith.addf %46, %47 : vector<8x128xf32>
    %cst_22 = arith.constant 0.000000e+00 : f32
    %49 = vector.broadcast %cst_22 : f32 to vector<8x128xf32>
    %50 = arith.maximumf %48, %49 : vector<8x128xf32>
    %c0_23 = arith.constant 0 : index
    %c0_24 = arith.constant 0 : index
    %51 = vector.load %arg3[%c0_23, %c0_24] : memref<128x128xf32, #tpu.memory_space<vmem>>, vector<128x128xf32>
    %cst_25 = arith.constant dense<0.000000e+00> : vector<8x128xf32>
    %52 = tpu.matmul %50, %51, %cst_25 {dimension_numbers = #tpu.dot_dimension_numbers<[1], [0], [0], [1], [0, 0, 1, 1], [], []>} : vector<8x128xf32>, vector<128x128xf32>, vector<8x128xf32> -> vector<8x128xf32>
    %c2 = arith.constant 2 : index
    %c0_26 = arith.constant 0 : index
    %53 = vector.load %arg7[%c2, %c0_26] : memref<11x256xf32, #tpu.memory_space<vmem>>, vector<1x128xf32>
    %c7 = arith.constant 7 : index
    %c0_27 = arith.constant 0 : index
    %54 = vector.load %arg7[%c7, %c0_27] : memref<11x256xf32, #tpu.memory_space<vmem>>, vector<1x128xf32>
    %cst_28 = arith.constant dense<0.000000e+00> : vector<128xf32>
    %55 = vector.multi_reduction <add>, %52, %cst_28 [0] : vector<8x128xf32> to vector<128xf32>
    %56 = vector.shape_cast %55 : vector<128xf32> to vector<1x128xf32>
    %cst_29 = arith.constant 8.000000e+00 : f32
    %57 = vector.broadcast %cst_29 : f32 to vector<1x128xf32>
    %58 = arith.divf %56, %57 : vector<1x128xf32>
    %59 = vector.broadcast %58 : vector<1x128xf32> to vector<8x128xf32>
    %60 = arith.subf %52, %59 : vector<8x128xf32>
    %61 = arith.mulf %60, %60 : vector<8x128xf32>
    %cst_30 = arith.constant dense<0.000000e+00> : vector<128xf32>
    %62 = vector.multi_reduction <add>, %61, %cst_30 [0] : vector<8x128xf32> to vector<128xf32>
    %63 = vector.shape_cast %62 : vector<128xf32> to vector<1x128xf32>
    %cst_31 = arith.constant 8.000000e+00 : f32
    %64 = vector.broadcast %cst_31 : f32 to vector<1x128xf32>
    %65 = arith.divf %63, %64 : vector<1x128xf32>
    %cst_32 = arith.constant 9.99999974E-6 : f32
    %66 = vector.broadcast %cst_32 : f32 to vector<1x128xf32>
    %67 = arith.addf %65, %66 : vector<1x128xf32>
    %68 = math.rsqrt %67 : vector<1x128xf32>
    %69 = arith.mulf %53, %68 : vector<1x128xf32>
    %70 = vector.broadcast %69 : vector<1x128xf32> to vector<8x128xf32>
    %71 = arith.mulf %60, %70 : vector<8x128xf32>
    %72 = vector.broadcast %54 : vector<1x128xf32> to vector<8x128xf32>
    %73 = arith.addf %71, %72 : vector<8x128xf32>
    %cst_33 = arith.constant 0.000000e+00 : f32
    %74 = vector.broadcast %cst_33 : f32 to vector<8x128xf32>
    %75 = arith.maximumf %73, %74 : vector<8x128xf32>
    %c0_34 = arith.constant 0 : index
    %c0_35 = arith.constant 0 : index
    %76 = vector.load %arg4[%c0_34, %c0_35] : memref<128x128xf32, #tpu.memory_space<vmem>>, vector<128x128xf32>
    %cst_36 = arith.constant dense<0.000000e+00> : vector<8x128xf32>
    %77 = tpu.matmul %75, %76, %cst_36 {dimension_numbers = #tpu.dot_dimension_numbers<[1], [0], [0], [1], [0, 0, 1, 1], [], []>} : vector<8x128xf32>, vector<128x128xf32>, vector<8x128xf32> -> vector<8x128xf32>
    %c3 = arith.constant 3 : index
    %c0_37 = arith.constant 0 : index
    %78 = vector.load %arg7[%c3, %c0_37] : memref<11x256xf32, #tpu.memory_space<vmem>>, vector<1x128xf32>
    %c8 = arith.constant 8 : index
    %c0_38 = arith.constant 0 : index
    %79 = vector.load %arg7[%c8, %c0_38] : memref<11x256xf32, #tpu.memory_space<vmem>>, vector<1x128xf32>
    %cst_39 = arith.constant dense<0.000000e+00> : vector<128xf32>
    %80 = vector.multi_reduction <add>, %77, %cst_39 [0] : vector<8x128xf32> to vector<128xf32>
    %81 = vector.shape_cast %80 : vector<128xf32> to vector<1x128xf32>
    %cst_40 = arith.constant 8.000000e+00 : f32
    %82 = vector.broadcast %cst_40 : f32 to vector<1x128xf32>
    %83 = arith.divf %81, %82 : vector<1x128xf32>
    %84 = vector.broadcast %83 : vector<1x128xf32> to vector<8x128xf32>
    %85 = arith.subf %77, %84 : vector<8x128xf32>
    %86 = arith.mulf %85, %85 : vector<8x128xf32>
    %cst_41 = arith.constant dense<0.000000e+00> : vector<128xf32>
    %87 = vector.multi_reduction <add>, %86, %cst_41 [0] : vector<8x128xf32> to vector<128xf32>
    %88 = vector.shape_cast %87 : vector<128xf32> to vector<1x128xf32>
    %cst_42 = arith.constant 8.000000e+00 : f32
    %89 = vector.broadcast %cst_42 : f32 to vector<1x128xf32>
    %90 = arith.divf %88, %89 : vector<1x128xf32>
    %cst_43 = arith.constant 9.99999974E-6 : f32
    %91 = vector.broadcast %cst_43 : f32 to vector<1x128xf32>
    %92 = arith.addf %90, %91 : vector<1x128xf32>
    %93 = math.rsqrt %92 : vector<1x128xf32>
    %94 = arith.mulf %78, %93 : vector<1x128xf32>
    %95 = vector.broadcast %94 : vector<1x128xf32> to vector<8x128xf32>
    %96 = arith.mulf %85, %95 : vector<8x128xf32>
    %97 = vector.broadcast %79 : vector<1x128xf32> to vector<8x128xf32>
    %98 = arith.addf %96, %97 : vector<8x128xf32>
    %cst_44 = arith.constant 0.000000e+00 : f32
    %99 = vector.broadcast %cst_44 : f32 to vector<8x128xf32>
    %100 = arith.maximumf %98, %99 : vector<8x128xf32>
    %c0_45 = arith.constant 0 : index
    %c0_46 = arith.constant 0 : index
    %101 = vector.load %arg5[%c0_45, %c0_46] : memref<128x256xf32, #tpu.memory_space<vmem>>, vector<128x256xf32>
    %cst_47 = arith.constant dense<0.000000e+00> : vector<8x256xf32>
    %102 = tpu.matmul %100, %101, %cst_47 {dimension_numbers = #tpu.dot_dimension_numbers<[1], [0], [0], [1], [0, 0, 1, 1], [], []>} : vector<8x128xf32>, vector<128x256xf32>, vector<8x256xf32> -> vector<8x256xf32>
    %c4 = arith.constant 4 : index
    %c0_48 = arith.constant 0 : index
    %103 = vector.load %arg7[%c4, %c0_48] : memref<11x256xf32, #tpu.memory_space<vmem>>, vector<1x256xf32>
    %c9 = arith.constant 9 : index
    %c0_49 = arith.constant 0 : index
    %104 = vector.load %arg7[%c9, %c0_49] : memref<11x256xf32, #tpu.memory_space<vmem>>, vector<1x256xf32>
    %cst_50 = arith.constant dense<0.000000e+00> : vector<256xf32>
    %105 = vector.multi_reduction <add>, %102, %cst_50 [0] : vector<8x256xf32> to vector<256xf32>
    %106 = vector.shape_cast %105 : vector<256xf32> to vector<1x256xf32>
    %cst_51 = arith.constant 8.000000e+00 : f32
    %107 = vector.broadcast %cst_51 : f32 to vector<1x256xf32>
    %108 = arith.divf %106, %107 : vector<1x256xf32>
    %109 = vector.broadcast %108 : vector<1x256xf32> to vector<8x256xf32>
    %110 = arith.subf %102, %109 : vector<8x256xf32>
    %111 = arith.mulf %110, %110 : vector<8x256xf32>
    %cst_52 = arith.constant dense<0.000000e+00> : vector<256xf32>
    %112 = vector.multi_reduction <add>, %111, %cst_52 [0] : vector<8x256xf32> to vector<256xf32>
    %113 = vector.shape_cast %112 : vector<256xf32> to vector<1x256xf32>
    %cst_53 = arith.constant 8.000000e+00 : f32
    %114 = vector.broadcast %cst_53 : f32 to vector<1x256xf32>
    %115 = arith.divf %113, %114 : vector<1x256xf32>
    %cst_54 = arith.constant 9.99999974E-6 : f32
    %116 = vector.broadcast %cst_54 : f32 to vector<1x256xf32>
    %117 = arith.addf %115, %116 : vector<1x256xf32>
    %118 = math.rsqrt %117 : vector<1x256xf32>
    %119 = arith.mulf %103, %118 : vector<1x256xf32>
    %120 = vector.broadcast %119 : vector<1x256xf32> to vector<8x256xf32>
    %121 = arith.mulf %110, %120 : vector<8x256xf32>
    %122 = vector.broadcast %104 : vector<1x256xf32> to vector<8x256xf32>
    %123 = arith.addf %121, %122 : vector<8x256xf32>
    %cst_55 = arith.constant 0.000000e+00 : f32
    %124 = vector.broadcast %cst_55 : f32 to vector<8x256xf32>
    %125 = arith.maximumf %123, %124 : vector<8x256xf32>
    %c0_56 = arith.constant 0 : index
    %c0_57 = arith.constant 0 : index
    %126 = vector.load %arg6[%c0_56, %c0_57] : memref<256x128xf32, #tpu.memory_space<vmem>>, vector<256x128xf32>
    %cst_58 = arith.constant dense<0.000000e+00> : vector<8x128xf32>
    %127 = tpu.matmul %125, %126, %cst_58 {dimension_numbers = #tpu.dot_dimension_numbers<[1], [0], [0], [1], [0, 0, 1, 1], [], []>} : vector<8x256xf32>, vector<256x128xf32>, vector<8x128xf32> -> vector<8x128xf32>
    %c10 = arith.constant 10 : index
    %c0_59 = arith.constant 0 : index
    %128 = vector.load %arg7[%c10, %c0_59] : memref<11x256xf32, #tpu.memory_space<vmem>>, vector<1x128xf32>
    %129 = vector.broadcast %128 : vector<1x128xf32> to vector<8x128xf32>
    %130 = arith.addf %127, %129 : vector<8x128xf32>
    %c0_60 = arith.constant 0 : index
    %c0_61 = arith.constant 0 : index
    %131 = vector.load %arg8[%c0_60, %c0_61] : memref<8x128xf32, #tpu.memory_space<vmem>>, vector<8x128xf32>
    tpu.vector_store %arg8[%c0_60, %c0_61], %130 {strides = array<i32>} : memref<8x128xf32, #tpu.memory_space<vmem>>, vector<8x128xf32>,
    return
  }
}

</mosaic_0001>

<llo_original>
// kernel: decoder_forward.1
$region0: #{decoder_forward.1}
  #allocation0 [shape = 'u32[]', space=smem, size = 0x4, offset = 0x4, fixed_abs, tag = 'smem constant byte address 0x4 - core index']
  #allocation1 [shape = 'u32[144,128]{1,0:T(1,128)}', space=vmem, size = 0x12000, scoped, tag = 'internal scratch']
  %s0 = inlined_call_operand.vmem [shape: f32[8,128], index: 0, kind: input, shape index: {}]
  %s1 = inlined_call_operand.hbm [shape: f32[128,128], index: 1, kind: input, shape index: {}]
  %s2 = inlined_call_operand.hbm [shape: f32[128,128], index: 2, kind: input, shape index: {}]
  %s3 = inlined_call_operand.hbm [shape: f32[128,128], index: 3, kind: input, shape index: {}]
  %s4 = inlined_call_operand.hbm [shape: f32[128,128], index: 4, kind: input, shape index: {}]
  %s5 = inlined_call_operand.hbm [shape: f32[128,256], index: 5, kind: input, shape index: {}]
  %s6 = inlined_call_operand.hbm [shape: f32[256,128], index: 6, kind: input, shape index: {}]
  %s7 = inlined_call_operand.vmem [shape: f32[11,256], index: 7, kind: input, shape index: {}]
  %s8 = inlined_call_operand.hbm [shape: f32[8,128], index: 8, kind: output, shape index: {}]
  %s9 = sld [smem:[#allocation0]]
  $region66: #{decoder_forward.1} parent=0
    _
  %s11 = ssub.s32 1, %s9
  %s12 = scalar_select 0, %s11, %s9
  $region1: #{decoder_forward.1} parent=0
    #allocation2 [shape = 'u8[65536]{0}', space=vmem, size = 0x10000, scoped, tag = 'input window, operand 1, single buffered']
    #allocation3 [shape = 's32[1]{0}', space=sflag, size = 0x4, scoped, tag = 'scoped memory for decoder_forward.1']
    #allocation4 [shape = 's32[1]{0}', space=sflag, size = 0x4, scoped, tag = 'scoped memory for decoder_forward.1']
    #allocation5 [shape = 'u8[65536]{0}', space=vmem, size = 0x10000, scoped, tag = 'input window, operand 2, single buffered']
    #allocation6 [shape = 's32[1]{0}', space=sflag, size = 0x4, scoped, tag = 'scoped memory for decoder_forward.1']
    #allocation7 [shape = 'u8[65536]{0}', space=vmem, size = 0x10000, scoped, tag = 'input window, operand 3, single buffered']
    #allocation8 [shape = 'u8[65536]{0}', space=vmem, size = 0x10000, scoped, tag = 'input window, operand 4, single buffered']
    #allocation9 [shape = 's32[1]{0}', space=sflag, size = 0x4, scoped, tag = 'scoped memory for decoder_forward.1']
    #allocation10 [shape = 'u8[131072]{0}', space=vmem, size = 0x20000, scoped, tag = 'input window, operand 5, single buffered']
    #allocation11 [shape = 'u8[131072]{0}', space=vmem, size = 0x20000, scoped, tag = 'input window, operand 6, single buffered']
    #allocation12 [shape = 's32[1]{0}', space=sflag, size = 0x4, scoped, tag = 'scoped memory for decoder_forward.1']
    #allocation13 [shape = 'u8[4096]{0}', space=vmem, size = 0x1000, scoped, tag = 'output window, operand 0, single buffered']
    %13 = vsyncpa [#allocation3], 0
    %14 = vsyncpa [#allocation6], 0
    %15 = vsyncpa [#allocation9], 0
    %16 = vsyncpa [#allocation12], 0
    %17 = vsyncpa [#allocation4], 0
    // Predicated region
    $region2: #{decoder_forward.1} parent=1 // pred_check
      _
    $region3: #{decoder_forward.1} parent=1 // pred_check_branch
      %19 = sbr.rel (0) target = $region5
    $region4: #{decoder_forward.1} parent=1 // pred_region
      _
    $region5: #{decoder_forward.1} parent=1 // pred_fallthru
      _
    // Predicated region
    $region6: #{decoder_forward.1} parent=1 // pred_check
      _
    $region7: #{decoder_forward.1} parent=1 // pred_check_branch
      %21 = sbr.rel (0) target = $region9
    $region8: #{decoder_forward.1} parent=1 // pred_region
      %s23 = ssub.s32 2048, 2048
      %24 = vsyncadd [#allocation3], %s23
      %s25 = sshll.u32 [#allocation2], 4
      %s26 = int_to_ptr.vmem [resolvable:$true] %s25
      %31 = dma.hbm_to_vmem [thread:$0]  %s1, 2048, %s26, [#allocation3], 128, 128, 8
    $region9: #{decoder_forward.1} parent=1 // pred_fallthru
      _
    // Predicated region
    $region10: #{decoder_forward.1} parent=1 // pred_check
      _
    $region11: #{decoder_forward.1} parent=1 // pred_check_branch
      %33 = sbr.rel (0) target = $region13
    $region12: #{decoder_forward.1} parent=1 // pred_region
      %s35 = ssub.s32 2048, 2048
      %36 = vsyncadd [#allocation6], %s35
      %s37 = sshll.u32 [#allocation5], 4
      %s38 = int_to_ptr.vmem [resolvable:$true] %s37
      %43 = dma.hbm_to_vmem [thread:$0]  %s2, 2048, %s38, [#allocation6], 128, 128, 8
    $region13: #{decoder_forward.1} parent=1 // pred_fallthru
      _
    // Predicated region
    $region14: #{decoder_forward.1} parent=1 // pred_check
      _
    $region15: #{decoder_forward.1} parent=1 // pred_check_branch
      %45 = sbr.rel (0) target = $region17
    $region16: #{decoder_forward.1} parent=1 // pred_region
      %s47 = ssub.s32 2048, 2048
      %48 = vsyncadd [#allocation6], %s47
      %s49 = sshll.u32 [#allocation7], 4
      %s50 = int_to_ptr.vmem [resolvable:$true] %s49
      %55 = dma.hbm_to_vmem [thread:$0]  %s3, 2048, %s50, [#allocation6], 128, 128, 8
    $region17: #{decoder_forward.1} parent=1 // pred_fallthru
      _
    // Predicated region
    $region18: #{decoder_forward.1} parent=1 // pred_check
      _
    $region19: #{decoder_forward.1} parent=1 // pred_check_branch
      %57 = sbr.rel (0) target = $region21
    $region20: #{decoder_forward.1} parent=1 // pred_region
      %s59 = ssub.s32 2048, 2048
      %60 = vsyncadd [#allocation9], %s59
      %s61 = sshll.u32 [#allocation8], 4
      %s62 = int_to_ptr.vmem [resolvable:$true] %s61
      %67 = dma.hbm_to_vmem [thread:$0]  %s4, 2048, %s62, [#allocation9], 128, 128, 8
    $region21: #{decoder_forward.1} parent=1 // pred_fallthru
      _
    // Predicated region
    $region22: #{decoder_forward.1} parent=1 // pred_check
      _
    $region23: #{decoder_forward.1} parent=1 // pred_check_branch
      %69 = sbr.rel (0) target = $region25
    $region24: #{decoder_forward.1} parent=1 // pred_region
      %s71 = ssub.s32 4096, 4096
      %72 = vsyncadd [#allocation9], %s71
      %s73 = sshll.u32 [#allocation10], 4
      %s74 = int_to_ptr.vmem [resolvable:$true] %s73
      %79 = dma.hbm_to_vmem [thread:$0]  %s5, 4096, %s74, [#allocation9], 256, 256, 16
    $region25: #{decoder_forward.1} parent=1 // pred_fallthru
      _
    // Predicated region
    $region26: #{decoder_forward.1} parent=1 // pred_check
      _
    $region27: #{decoder_forward.1} parent=1 // pred_check_branch
      %81 = sbr.rel (0) target = $region29
    $region28: #{decoder_forward.1} parent=1 // pred_region
      %s83 = ssub.s32 4096, 4096
      %84 = vsyncadd [#allocation12], %s83
      %s85 = sshll.u32 [#allocation11], 4
      %s86 = int_to_ptr.vmem [resolvable:$true] %s85
      %91 = dma.hbm_to_vmem [thread:$0]  %s6, 4096, %s86, [#allocation12], 128, 128, 8
    $region29: #{decoder_forward.1} parent=1 // pred_fallthru
      _
    // Predicated region
    $region30: #{decoder_forward.1} parent=1 // pred_check
      _
    $region31: #{decoder_forward.1} parent=1 // pred_check_branch
      %93 = sbr.rel (0) target = $region33
    $region32: #{decoder_forward.1} parent=1 // pred_region
      _
    $region33: #{decoder_forward.1} parent=1 // pred_fallthru
      _
    // Predicated region
    $region34: #{decoder_forward.1} parent=1 // pred_check
      _
    $region35: #{decoder_forward.1} parent=1 // pred_check_branch
      %95 = sbr.rel (0) target = $region37
    $region36: #{decoder_forward.1} parent=1 // pred_region
      %96 = dma.done [#allocation3], 2048
    $region37: #{decoder_forward.1} parent=1 // pred_fallthru
      _
    // Predicated region
    $region38: #{decoder_forward.1} parent=1 // pred_check
      _
    $region39: #{decoder_forward.1} parent=1 // pred_check_branch
      %98 = sbr.rel (0) target = $region41
    $region40: #{decoder_forward.1} parent=1 // pred_region
      %99 = dma.done [#allocation6], 2048
    $region41: #{decoder_forward.1} parent=1 // pred_fallthru
      _
    // Predicated region
    $region42: #{decoder_forward.1} parent=1 // pred_check
      _
    $region43: #{decoder_forward.1} parent=1 // pred_check_branch
      %101 = sbr.rel (0) target = $region45
    $region44: #{decoder_forward.1} parent=1 // pred_region
      %102 = dma.done [#allocation6], 2048
    $region45: #{decoder_forward.1} parent=1 // pred_fallthru
      _
    // Predicated region
    $region46: #{decoder_forward.1} parent=1 // pred_check
      _
    $region47: #{decoder_forward.1} parent=1 // pred_check_branch
      %104 = sbr.rel (0) target = $region49
    $region48: #{decoder_forward.1} parent=1 // pred_region
      %105 = dma.done [#allocation9], 2048
    $region49: #{decoder_forward.1} parent=1 // pred_fallthru
      _
    // Predicated region
    $region50: #{decoder_forward.1} parent=1 // pred_check
      _
    $region51: #{decoder_forward.1} parent=1 // pred_check_branch
      %107 = sbr.rel (0) target = $region53
    $region52: #{decoder_forward.1} parent=1 // pred_region
      %108 = dma.done [#allocation9], 4096
    $region53: #{decoder_forward.1} parent=1 // pred_fallthru
      _
    // Predicated region
    $region54: #{decoder_forward.1} parent=1 // pred_check
      _
    $region55: #{decoder_forward.1} parent=1 // pred_check_branch
      %110 = sbr.rel (0) target = $region57
    $region56: #{decoder_forward.1} parent=1 // pred_region
      %111 = dma.done [#allocation12], 4096
    $region57: #{decoder_forward.1} parent=1 // pred_fallthru
      _
    %v112 = vld [vmem:[%s0] sm:$0xff]
    %v113 = vld [vmem:[#allocation2] sm:$0xff]
    %v114 = vld [vmem:[#allocation2 + $0x8] sm:$0xff]
    %v115 = vld [vmem:[#allocation2 + $0x10] sm:$0xff]
    %v116 = vld [vmem:[#allocation2 + $0x18] sm:$0xff]
    %v117 = vld [vmem:[#allocation2 + $0x20] sm:$0xff]
    %v118 = vld [vmem:[#allocation2 + $0x28] sm:$0xff]
    %v119 = vld [vmem:[#allocation2 + $0x30] sm:$0xff]
    %v120 = vld [vmem:[#allocation2 + $0x38] sm:$0xff]
    %v121 = vld [vmem:[#allocation2 + $0x40] sm:$0xff]
    %v122 = vld [vmem:[#allocation2 + $0x48] sm:$0xff]
    %v123 = vld [vmem:[#allocation2 + $0x50] sm:$0xff]
    %v124 = vld [vmem:[#allocation2 + $0x58] sm:$0xff]
    %v125 = vld [vmem:[#allocation2 + $0x60] sm:$0xff]
    %v126 = vld [vmem:[#allocation2 + $0x68] sm:$0xff]
    %v127 = vld [vmem:[#allocation2 + $0x70] sm:$0xff]
    %v128 = vld [vmem:[#allocation2 + $0x78] sm:$0xff]
    %129 = vmatprep.subr.mxu0 0.0
    %130 = vmatpush1.msra.mxu0 %v113
    %131 = vmatprep.subr.mxu0 0.0
    %132 = vmatpush1.msra.mxu0 %v114
    %133 = vmatprep.subr.mxu0 0.0
    %134 = vmatpush1.msra.mxu0 %v115
    %135 = vmatprep.subr.mxu0 0.0
    %136 = vmatpush1.msra.mxu0 %v116
    %137 = vmatprep.subr.mxu0 0.0
    %138 = vmatpush1.msra.mxu0 %v117
    %139 = vmatprep.subr.mxu0 0.0
    %140 = vmatpush1.msra.mxu0 %v118
    %141 = vmatprep.subr.mxu0 0.0
    %142 = vmatpush1.msra.mxu0 %v119
    %143 = vmatprep.subr.mxu0 0.0
    %144 = vmatpush1.msra.mxu0 %v120
    %145 = vmatprep.subr.mxu0 0.0
    %146 = vmatpush1.msra.mxu0 %v121
    %147 = vmatprep.subr.mxu0 0.0
    %148 = vmatpush1.msra.mxu0 %v122
    %149 = vmatprep.subr.mxu0 0.0
    %150 = vmatpush1.msra.mxu0 %v123
    %151 = vmatprep.subr.mxu0 0.0
    %152 = vmatpush1.msra.mxu0 %v124
    %153 = vmatprep.subr.mxu0 0.0
    %154 = vmatpush1.msra.mxu0 %v125
    %155 = vmatprep.subr.mxu0 0.0
    %156 = vmatpush1.msra.mxu0 %v126
    %157 = vmatprep.subr.mxu0 0.0
    %158 = vmatpush1.msra.mxu0 %v127
    %159 = vmatprep.subr.mxu0 0.0
    %160 = vmatpush1.msra.mxu0 %v128
    %161 = vmatprep.subr.mxu0 0.0
    %162 = vmatpush1.msra.mxu0 0.0
    %163 = vmatprep.subr.mxu0 0.0
    %164 = vmatpush1.msra.mxu0 0.0
    %165 = vmatprep.subr.mxu0 0.0
    %166 = vmatpush1.msra.mxu0 0.0
    %167 = vmatprep.subr.mxu0 0.0
    %168 = vmatpush1.msra.mxu0 0.0
    %169 = vmatprep.subr.mxu0 0.0
    %170 = vmatpush1.msra.mxu0 0.0
    %171 = vmatprep.subr.mxu0 0.0
    %172 = vmatpush1.msra.mxu0 0.0
    %173 = vmatprep.subr.mxu0 0.0
    %174 = vmatpush1.msra.mxu0 0.0
    %175 = vmatprep.subr.mxu0 0.0
    %176 = vmatpush1.msra.mxu0 0.0
    %177 = vmatprep.subr.mxu0 0.0
    %178 = vmatpush1.msra.mxu0 0.0
    %179 = vmatprep.subr.mxu0 0.0
    %180 = vmatpush1.msra.mxu0 0.0
    %181 = vmatprep.subr.mxu0 0.0
    %182 = vmatpush1.msra.mxu0 0.0
    %183 = vmatprep.subr.mxu0 0.0
    %184 = vmatpush1.msra.mxu0 0.0
    %185 = vmatprep.subr.mxu0 0.0
    %186 = vmatpush1.msra.mxu0 0.0
    %187 = vmatprep.subr.mxu0 0.0
    %188 = vmatpush1.msra.mxu0 0.0
    %189 = vmatprep.subr.mxu0 0.0
    %190 = vmatpush1.msra.mxu0 0.0
    %191 = vmatprep.subr.mxu0 0.0
    %192 = vmatpush1.msra.mxu0 0.0
    %193 = vmatprep.mubr.f32.mxu0 0.0
    %194 = vmatmul.mubr.f32.gmra.mrb[0].mxu0 %v112
    %v195 = vpop.f32.mrb[0].mxu0
    %v196 = vadd.f32 0.0, %v195
    %v197 = vpop.f32.mrb[0].mxu0
    %198 = vdwg.mxu0
    %v199 = vld [vmem:[%s7] ss:$0 sm:$0xff]
    %v200 = vld [vmem:[%s7 + $0x5] ss:$0 sm:$0xff]
    %v201 = vrot.slane %v196, 4
    %v202 = vadd.f32 %v196, %v201
    %v203 = vrot.slane %v202, 2
    %v204 = vadd.f32 %v202, %v203
    %v205 = vrot.slane %v204, 1
    %v206 = vadd.f32 %v204, %v205
    %v207 = vrcp.pop 8.0
    %v208 = vmul.f32 %v206, %v207
    %v209 = vsub.f32 %v196, %v208
    %v210 = vmul.f32 %v209, %v209
    %v211 = vrot.slane %v210, 4
    %v212 = vadd.f32 %v210, %v211
    %v213 = vrot.slane %v212, 2
    %v214 = vadd.f32 %v212, %v213
    %v215 = vrot.slane %v214, 1
    %v216 = vadd.f32 %v214, %v215
    %v217 = vmul.f32 %v216, %v207
    %v218 = vadd.f32 %v217, 1e-05
    %v219 = vrsqrt.pop %v218
    %v220 = vmul.f32 %v199, %v219
    %v221 = vmul.f32 %v209, %v220
    %v222 = vadd.f32 %v221, %v200
    %v223 = vmax.f32 %v222, 0.0
    %v224 = vld [vmem:[#allocation5] sm:$0xff]
    %v225 = vld [vmem:[#allocation5 + $0x8] sm:$0xff]
    %v226 = vld [vmem:[#allocation5 + $0x10] sm:$0xff]
    %v227 = vld [vmem:[#allocation5 + $0x18] sm:$0xff]
    %v228 = vld [vmem:[#allocation5 + $0x20] sm:$0xff]
    %v229 = vld [vmem:[#allocation5 + $0x28] sm:$0xff]
    %v230 = vld [vmem:[#allocation5 + $0x30] sm:$0xff]
    %v231 = vld [vmem:[#allocation5 + $0x38] sm:$0xff]
    %v232 = vld [vmem:[#allocation5 + $0x40] sm:$0xff]
    %v233 = vld [vmem:[#allocation5 + $0x48] sm:$0xff]
    %v234 = vld [vmem:[#allocation5 + $0x50] sm:$0xff]
    %v235 = vld [vmem:[#allocation5 + $0x58] sm:$0xff]
    %v236 = vld [vmem:[#allocation5 + $0x60] sm:$0xff]
    %v237 = vld [vmem:[#allocation5 + $0x68] sm:$0xff]
    %v238 = vld [vmem:[#allocation5 + $0x70] sm:$0xff]
    %v239 = vld [vmem:[#allocation5 + $0x78] sm:$0xff]
    %240 = vmatprep.subr.mxu0 0.0
    %241 = vmatpush1.msra.mxu0 %v224
    %242 = vmatprep.subr.mxu0 0.0
    %243 = vmatpush1.msra.mxu0 %v225
    %244 = vmatprep.subr.mxu0 0.0
    %245 = vmatpush1.msra.mxu0 %v226
    %246 = vmatprep.subr.mxu0 0.0
    %247 = vmatpush1.msra.mxu0 %v227
    %248 = vmatprep.subr.mxu0 0.0
    %249 = vmatpush1.msra.mxu0 %v228
    %250 = vmatprep.subr.mxu0 0.0
    %251 = vmatpush1.msra.mxu0 %v229
    %252 = vmatprep.subr.mxu0 0.0
    %253 = vmatpush1.msra.mxu0 %v230
    %254 = vmatprep.subr.mxu0 0.0
    %255 = vmatpush1.msra.mxu0 %v231
    %256 = vmatprep.subr.mxu0 0.0
    %257 = vmatpush1.msra.mxu0 %v232
    %258 = vmatprep.subr.mxu0 0.0
    %259 = vmatpush1.msra.mxu0 %v233
    %260 = vmatprep.subr.mxu0 0.0
    %261 = vmatpush1.msra.mxu0 %v234
    %262 = vmatprep.subr.mxu0 0.0
    %263 = vmatpush1.msra.mxu0 %v235
    %264 = vmatprep.subr.mxu0 0.0
    %265 = vmatpush1.msra.mxu0 %v236
    %266 = vmatprep.subr.mxu0 0.0
    %267 = vmatpush1.msra.mxu0 %v237
    %268 = vmatprep.subr.mxu0 0.0
    %269 = vmatpush1.msra.mxu0 %v238
    %270 = vmatprep.subr.mxu0 0.0
    %271 = vmatpush1.msra.mxu0 %v239
    %272 = vmatprep.subr.mxu0 0.0
    %273 = vmatpush1.msra.mxu0 0.0
    %274 = vmatprep.subr.mxu0 0.0
    %275 = vmatpush1.msra.mxu0 0.0
    %276 = vmatprep.subr.mxu0 0.0
    %277 = vmatpush1.msra.mxu0 0.0
    %278 = vmatprep.subr.mxu0 0.0
    %279 = vmatpush1.msra.mxu0 0.0
    %280 = vmatprep.subr.mxu0 0.0
    %281 = vmatpush1.msra.mxu0 0.0
    %282 = vmatprep.subr.mxu0 0.0
    %283 = vmatpush1.msra.mxu0 0.0
    %284 = vmatprep.subr.mxu0 0.0
    %285 = vmatpush1.msra.mxu0 0.0
    %286 = vmatprep.subr.mxu0 0.0
    %287 = vmatpush1.msra.mxu0 0.0
    %288 = vmatprep.subr.mxu0 0.0
    %289 = vmatpush1.msra.mxu0 0.0
    %290 = vmatprep.subr.mxu0 0.0
    %291 = vmatpush1.msra.mxu0 0.0
    %292 = vmatprep.subr.mxu0 0.0
    %293 = vmatpush1.msra.mxu0 0.0
    %294 = vmatprep.subr.mxu0 0.0
    %295 = vmatpush1.msra.mxu0 0.0
    %296 = vmatprep.subr.mxu0 0.0
    %297 = vmatpush1.msra.mxu0 0.0
    %298 = vmatprep.subr.mxu0 0.0
    %299 = vmatpush1.msra.mxu0 0.0
    %300 = vmatprep.subr.mxu0 0.0
    %301 = vmatpush1.msra.mxu0 0.0
    %302 = vmatprep.subr.mxu0 0.0
    %303 = vmatpush1.msra.mxu0 0.0
    %304 = vmatprep.mubr.f32.mxu0 0.0
    %305 = vmatmul.mubr.f32.gmra.mrb[0].mxu0 %v223
    %v306 = vpop.f32.mrb[0].mxu0
    %v307 = vadd.f32 0.0, %v306
    %v308 = vpop.f32.mrb[0].mxu0
    %309 = vdwg.mxu0
    %v310 = vld [vmem:[%s7 + $0x1] ss:$0 sm:$0xff]
    %v311 = vld [vmem:[%s7 + $0x6] ss:$0 sm:$0xff]
    %v312 = vrot.slane %v307, 4
    %v313 = vadd.f32 %v307, %v312
    %v314 = vrot.slane %v313, 2
    %v315 = vadd.f32 %v313, %v314
    %v316 = vrot.slane %v315, 1
    %v317 = vadd.f32 %v315, %v316
    %v318 = vmul.f32 %v317, %v207
    %v319 = vsub.f32 %v307, %v318
    %v320 = vmul.f32 %v319, %v319
    %v321 = vrot.slane %v320, 4
    %v322 = vadd.f32 %v320, %v321
    %v323 = vrot.slane %v322, 2
    %v324 = vadd.f32 %v322, %v323
    %v325 = vrot.slane %v324, 1
    %v326 = vadd.f32 %v324, %v325
    %v327 = vmul.f32 %v326, %v207
    %v328 = vadd.f32 %v327, 1e-05
    %v329 = vrsqrt.pop %v328
    %v330 = vmul.f32 %v310, %v329
    %v331 = vmul.f32 %v319, %v330
    %v332 = vadd.f32 %v331, %v311
    %v333 = vmax.f32 %v332, 0.0
    %v334 = vld [vmem:[#allocation7] sm:$0xff]
    %v335 = vld [vmem:[#allocation7 + $0x8] sm:$0xff]
    %v336 = vld [vmem:[#allocation7 + $0x10] sm:$0xff]
    %v337 = vld [vmem:[#allocation7 + $0x18] sm:$0xff]
    %v338 = vld [vmem:[#allocation7 + $0x20] sm:$0xff]
    %v339 = vld [vmem:[#allocation7 + $0x28] sm:$0xff]
    %v340 = vld [vmem:[#allocation7 + $0x30] sm:$0xff]
    %v341 = vld [vmem:[#allocation7 + $0x38] sm:$0xff]
    %v342 = vld [vmem:[#allocation7 + $0x40] sm:$0xff]
    %v343 = vld [vmem:[#allocation7 + $0x48] sm:$0xff]
    %v344 = vld [vmem:[#allocation7 + $0x50] sm:$0xff]
    %v345 = vld [vmem:[#allocation7 + $0x58] sm:$0xff]
    %v346 = vld [vmem:[#allocation7 + $0x60] sm:$0xff]
    %v347 = vld [vmem:[#allocation7 + $0x68] sm:$0xff]
    %v348 = vld [vmem:[#allocation7 + $0x70] sm:$0xff]
    %v349 = vld [vmem:[#allocation7 + $0x78] sm:$0xff]
    %350 = vmatprep.subr.mxu0 0.0
    %351 = vmatpush1.msra.mxu0 %v334
    %352 = vmatprep.subr.mxu0 0.0
    %353 = vmatpush1.msra.mxu0 %v335
    %354 = vmatprep.subr.mxu0 0.0
    %355 = vmatpush1.msra.mxu0 %v336
    %356 = vmatprep.subr.mxu0 0.0
    %357 = vmatpush1.msra.mxu0 %v337
    %358 = vmatprep.subr.mxu0 0.0
    %359 = vmatpush1.msra.mxu0 %v338
    %360 = vmatprep.subr.mxu0 0.0
    %361 = vmatpush1.msra.mxu0 %v339
    %362 = vmatprep.subr.mxu0 0.0
    %363 = vmatpush1.msra.mxu0 %v340
    %364 = vmatprep.subr.mxu0 0.0
    %365 = vmatpush1.msra.mxu0 %v341
    %366 = vmatprep.subr.mxu0 0.0
    %367 = vmatpush1.msra.mxu0 %v342
    %368 = vmatprep.subr.mxu0 0.0
    %369 = vmatpush1.msra.mxu0 %v343
    %370 = vmatprep.subr.mxu0 0.0
    %371 = vmatpush1.msra.mxu0 %v344
    %372 = vmatprep.subr.mxu0 0.0
    %373 = vmatpush1.msra.mxu0 %v345
    %374 = vmatprep.subr.mxu0 0.0
    %375 = vmatpush1.msra.mxu0 %v346
    %376 = vmatprep.subr.mxu0 0.0
    %377 = vmatpush1.msra.mxu0 %v347
    %378 = vmatprep.subr.mxu0 0.0
    %379 = vmatpush1.msra.mxu0 %v348
    %380 = vmatprep.subr.mxu0 0.0
    %381 = vmatpush1.msra.mxu0 %v349
    %382 = vmatprep.subr.mxu0 0.0
    %383 = vmatpush1.msra.mxu0 0.0
    %384 = vmatprep.subr.mxu0 0.0
    %385 = vmatpush1.msra.mxu0 0.0
    %386 = vmatprep.subr.mxu0 0.0
    %387 = vmatpush1.msra.mxu0 0.0
    %388 = vmatprep.subr.mxu0 0.0
    %389 = vmatpush1.msra.mxu0 0.0
    %390 = vmatprep.subr.mxu0 0.0
    %391 = vmatpush1.msra.mxu0 0.0
    %392 = vmatprep.subr.mxu0 0.0
    %393 = vmatpush1.msra.mxu0 0.0
    %394 = vmatprep.subr.mxu0 0.0
    %395 = vmatpush1.msra.mxu0 0.0
    %396 = vmatprep.subr.mxu0 0.0
    %397 = vmatpush1.msra.mxu0 0.0
    %398 = vmatprep.subr.mxu0 0.0
    %399 = vmatpush1.msra.mxu0 0.0
    %400 = vmatprep.subr.mxu0 0.0
    %401 = vmatpush1.msra.mxu0 0.0
    %402 = vmatprep.subr.mxu0 0.0
    %403 = vmatpush1.msra.mxu0 0.0
    %404 = vmatprep.subr.mxu0 0.0
    %405 = vmatpush1.msra.mxu0 0.0
    %406 = vmatprep.subr.mxu0 0.0
    %407 = vmatpush1.msra.mxu0 0.0
    %408 = vmatprep.subr.mxu0 0.0
    %409 = vmatpush1.msra.mxu0 0.0
    %410 = vmatprep.subr.mxu0 0.0
    %411 = vmatpush1.msra.mxu0 0.0
    %412 = vmatprep.subr.mxu0 0.0
    %413 = vmatpush1.msra.mxu0 0.0
    %414 = vmatprep.mubr.f32.mxu0 0.0
    %415 = vmatmul.mubr.f32.gmra.mrb[0].mxu0 %v333
    %v416 = vpop.f32.mrb[0].mxu0
    %v417 = vadd.f32 0.0, %v416
    %v418 = vpop.f32.mrb[0].mxu0
    %419 = vdwg.mxu0
    %v420 = vld [vmem:[%s7 + $0x2] ss:$0 sm:$0xff]
    %v421 = vld [vmem:[%s7 + $0x7] ss:$0 sm:$0xff]
    %v422 = vrot.slane %v417, 4
    %v423 = vadd.f32 %v417, %v422
    %v424 = vrot.slane %v423, 2
    %v425 = vadd.f32 %v423, %v424
    %v426 = vrot.slane %v425, 1
    %v427 = vadd.f32 %v425, %v426
    %v428 = vmul.f32 %v427, %v207
    %v429 = vsub.f32 %v417, %v428
    %v430 = vmul.f32 %v429, %v429
    %v431 = vrot.slane %v430, 4
    %v432 = vadd.f32 %v430, %v431
    %v433 = vrot.slane %v432, 2
    %v434 = vadd.f32 %v432, %v433
    %v435 = vrot.slane %v434, 1
    %v436 = vadd.f32 %v434, %v435
    %v437 = vmul.f32 %v436, %v207
    %v438 = vadd.f32 %v437, 1e-05
    %v439 = vrsqrt.pop %v438
    %v440 = vmul.f32 %v420, %v439
    %v441 = vmul.f32 %v429, %v440
    %v442 = vadd.f32 %v441, %v421
    %v443 = vmax.f32 %v442, 0.0
    %v444 = vld [vmem:[#allocation8] sm:$0xff]
    %v445 = vld [vmem:[#allocation8 + $0x8] sm:$0xff]
    %v446 = vld [vmem:[#allocation8 + $0x10] sm:$0xff]
    %v447 = vld [vmem:[#allocation8 + $0x18] sm:$0xff]
    %v448 = vld [vmem:[#allocation8 + $0x20] sm:$0xff]
    %v449 = vld [vmem:[#allocation8 + $0x28] sm:$0xff]
    %v450 = vld [vmem:[#allocation8 + $0x30] sm:$0xff]
    %v451 = vld [vmem:[#allocation8 + $0x38] sm:$0xff]
    %v452 = vld [vmem:[#allocation8 + $0x40] sm:$0xff]
    %v453 = vld [vmem:[#allocation8 + $0x48] sm:$0xff]
    %v454 = vld [vmem:[#allocation8 + $0x50] sm:$0xff]
    %v455 = vld [vmem:[#allocation8 + $0x58] sm:$0xff]
    %v456 = vld [vmem:[#allocation8 + $0x60] sm:$0xff]
    %v457 = vld [vmem:[#allocation8 + $0x68] sm:$0xff]
    %v458 = vld [vmem:[#allocation8 + $0x70] sm:$0xff]
    %v459 = vld [vmem:[#allocation8 + $0x78] sm:$0xff]
    %460 = vmatprep.subr.mxu0 0.0
    %461 = vmatpush1.msra.mxu0 %v444
    %462 = vmatprep.subr.mxu0 0.0
    %463 = vmatpush1.msra.mxu0 %v445
    %464 = vmatprep.subr.mxu0 0.0
    %465 = vmatpush1.msra.mxu0 %v446
    %466 = vmatprep.subr.mxu0 0.0
    %467 = vmatpush1.msra.mxu0 %v447
    %468 = vmatprep.subr.mxu0 0.0
    %469 = vmatpush1.msra.mxu0 %v448
    %470 = vmatprep.subr.mxu0 0.0
    %471 = vmatpush1.msra.mxu0 %v449
    %472 = vmatprep.subr.mxu0 0.0
    %473 = vmatpush1.msra.mxu0 %v450
    %474 = vmatprep.subr.mxu0 0.0
    %475 = vmatpush1.msra.mxu0 %v451
    %476 = vmatprep.subr.mxu0 0.0
    %477 = vmatpush1.msra.mxu0 %v452
    %478 = vmatprep.subr.mxu0 0.0
    %479 = vmatpush1.msra.mxu0 %v453
    %480 = vmatprep.subr.mxu0 0.0
    %481 = vmatpush1.msra.mxu0 %v454
    %482 = vmatprep.subr.mxu0 0.0
    %483 = vmatpush1.msra.mxu0 %v455
    %484 = vmatprep.subr.mxu0 0.0
    %485 = vmatpush1.msra.mxu0 %v456
    %486 = vmatprep.subr.mxu0 0.0
    %487 = vmatpush1.msra.mxu0 %v457
    %488 = vmatprep.subr.mxu0 0.0
    %489 = vmatpush1.msra.mxu0 %v458
    %490 = vmatprep.subr.mxu0 0.0
    %491 = vmatpush1.msra.mxu0 %v459
    %492 = vmatprep.subr.mxu0 0.0
    %493 = vmatpush1.msra.mxu0 0.0
    %494 = vmatprep.subr.mxu0 0.0
    %495 = vmatpush1.msra.mxu0 0.0
    %496 = vmatprep.subr.mxu0 0.0
    %497 = vmatpush1.msra.mxu0 0.0
    %498 = vmatprep.subr.mxu0 0.0
    %499 = vmatpush1.msra.mxu0 0.0
    %500 = vmatprep.subr.mxu0 0.0
    %501 = vmatpush1.msra.mxu0 0.0
    %502 = vmatprep.subr.mxu0 0.0
    %503 = vmatpush1.msra.mxu0 0.0
    %504 = vmatprep.subr.mxu0 0.0
    %505 = vmatpush1.msra.mxu0 0.0
    %506 = vmatprep.subr.mxu0 0.0
    %507 = vmatpush1.msra.mxu0 0.0
    %508 = vmatprep.subr.mxu0 0.0
    %509 = vmatpush1.msra.mxu0 0.0
    %510 = vmatprep.subr.mxu0 0.0
    %511 = vmatpush1.msra.mxu0 0.0
    %512 = vmatprep.subr.mxu0 0.0
    %513 = vmatpush1.msra.mxu0 0.0
    %514 = vmatprep.subr.mxu0 0.0
    %515 = vmatpush1.msra.mxu0 0.0
    %516 = vmatprep.subr.mxu0 0.0
    %517 = vmatpush1.msra.mxu0 0.0
    %518 = vmatprep.subr.mxu0 0.0
    %519 = vmatpush1.msra.mxu0 0.0
    %520 = vmatprep.subr.mxu0 0.0
    %521 = vmatpush1.msra.mxu0 0.0
    %522 = vmatprep.subr.mxu0 0.0
    %523 = vmatpush1.msra.mxu0 0.0
    %524 = vmatprep.mubr.f32.mxu0 0.0
    %525 = vmatmul.mubr.f32.gmra.mrb[0].mxu0 %v443
    %v526 = vpop.f32.mrb[0].mxu0
    %v527 = vadd.f32 0.0, %v526
    %v528 = vpop.f32.mrb[0].mxu0
    %529 = vdwg.mxu0
    %v530 = vld [vmem:[%s7 + $0x3] ss:$0 sm:$0xff]
    %v531 = vld [vmem:[%s7 + $0x10] ss:$0 sm:$0xff]
    %v532 = vrot.slane %v527, 4
    %v533 = vadd.f32 %v527, %v532
    %v534 = vrot.slane %v533, 2
    %v535 = vadd.f32 %v533, %v534
    %v536 = vrot.slane %v535, 1
    %v537 = vadd.f32 %v535, %v536
    %v538 = vmul.f32 %v537, %v207
    %v539 = vsub.f32 %v527, %v538
    %v540 = vmul.f32 %v539, %v539
    %v541 = vrot.slane %v540, 4
    %v542 = vadd.f32 %v540, %v541
    %v543 = vrot.slane %v542, 2
    %v544 = vadd.f32 %v542, %v543
    %v545 = vrot.slane %v544, 1
    %v546 = vadd.f32 %v544, %v545
    %v547 = vmul.f32 %v546, %v207
    %v548 = vadd.f32 %v547, 1e-05
    %v549 = vrsqrt.pop %v548
    %v550 = vmul.f32 %v530, %v549
    %v551 = vmul.f32 %v539, %v550
    %v552 = vadd.f32 %v551, %v531
    %v553 = vmax.f32 %v552, 0.0
    %v554 = vld [vmem:[#allocation10] sm:$0xff]
    %v555 = vld [vmem:[#allocation10 + $0x8] sm:$0xff]
    %v556 = vld [vmem:[#allocation10 + $0x10] sm:$0xff]
    %v557 = vld [vmem:[#allocation10 + $0x18] sm:$0xff]
    %v558 = vld [vmem:[#allocation10 + $0x20] sm:$0xff]
    %v559 = vld [vmem:[#allocation10 + $0x28] sm:$0xff]
    %v560 = vld [vmem:[#allocation10 + $0x30] sm:$0xff]
    %v561 = vld [vmem:[#allocation10 + $0x38] sm:$0xff]
    %v562 = vld [vmem:[#allocation10 + $0x40] sm:$0xff]
    %v563 = vld [vmem:[#allocation10 + $0x48] sm:$0xff]
    %v564 = vld [vmem:[#allocation10 + $0x50] sm:$0xff]
    %v565 = vld [vmem:[#allocation10 + $0x58] sm:$0xff]
    %v566 = vld [vmem:[#allocation10 + $0x60] sm:$0xff]
    %v567 = vld [vmem:[#allocation10 + $0x68] sm:$0xff]
    %v568 = vld [vmem:[#allocation10 + $0x70] sm:$0xff]
    %v569 = vld [vmem:[#allocation10 + $0x78] sm:$0xff]
    %v570 = vld [vmem:[#allocation10 + $0x80] sm:$0xff]
    %v571 = vld [vmem:[#allocation10 + $0x88] sm:$0xff]
    %v572 = vld [vmem:[#allocation10 + $0x90] sm:$0xff]
    %v573 = vld [vmem:[#allocation10 + $0x98] sm:$0xff]
    %v574 = vld [vmem:[#allocation10 + $0xa0] sm:$0xff]
    %v575 = vld [vmem:[#allocation10 + $0xa8] sm:$0xff]
    %v576 = vld [vmem:[#allocation10 + $0xb0] sm:$0xff]
    %v577 = vld [vmem:[#allocation10 + $0xb8] sm:$0xff]
    %v578 = vld [vmem:[#allocation10 + $0xc0] sm:$0xff]
    %v579 = vld [vmem:[#allocation10 + $0xc8] sm:$0xff]
    %v580 = vld [vmem:[#allocation10 + $0xd0] sm:$0xff]
    %v581 = vld [vmem:[#allocation10 + $0xd8] sm:$0xff]
    %v582 = vld [vmem:[#allocation10 + $0xe0] sm:$0xff]
    %v583 = vld [vmem:[#allocation10 + $0xe8] sm:$0xff]
    %v584 = vld [vmem:[#allocation10 + $0xf0] sm:$0xff]
    %v585 = vld [vmem:[#allocation10 + $0xf8] sm:$0xff]
    %586 = vmatprep.subr.mxu0 %v555
    %587 = vmatpush1.msra.mxu0 %v554
    %588 = vmatprep.subr.mxu0 %v557
    %589 = vmatpush1.msra.mxu0 %v556
    %590 = vmatprep.subr.mxu0 %v559
    %591 = vmatpush1.msra.mxu0 %v558
    %592 = vmatprep.subr.mxu0 %v561
    %593 = vmatpush1.msra.mxu0 %v560
    %594 = vmatprep.subr.mxu0 %v563
    %595 = vmatpush1.msra.mxu0 %v562
    %596 = vmatprep.subr.mxu0 %v565
    %597 = vmatpush1.msra.mxu0 %v564
    %598 = vmatprep.subr.mxu0 %v567
    %599 = vmatpush1.msra.mxu0 %v566
    %600 = vmatprep.subr.mxu0 %v569
    %601 = vmatpush1.msra.mxu0 %v568
    %602 = vmatprep.subr.mxu0 %v571
    %603 = vmatpush1.msra.mxu0 %v570
    %604 = vmatprep.subr.mxu0 %v573
    %605 = vmatpush1.msra.mxu0 %v572
    %606 = vmatprep.subr.mxu0 %v575
    %607 = vmatpush1.msra.mxu0 %v574
    %608 = vmatprep.subr.mxu0 %v577
    %609 = vmatpush1.msra.mxu0 %v576
    %610 = vmatprep.subr.mxu0 %v579
    %611 = vmatpush1.msra.mxu0 %v578
    %612 = vmatprep.subr.mxu0 %v581
    %613 = vmatpush1.msra.mxu0 %v580
    %614 = vmatprep.subr.mxu0 %v583
    %615 = vmatpush1.msra.mxu0 %v582
    %616 = vmatprep.subr.mxu0 %v585
    %617 = vmatpush1.msra.mxu0 %v584
    %618 = vmatprep.subr.mxu0 0.0
    %619 = vmatpush1.msra.mxu0 0.0
    %620 = vmatprep.subr.mxu0 0.0
    %621 = vmatpush1.msra.mxu0 0.0
    %622 = vmatprep.subr.mxu0 0.0
    %623 = vmatpush1.msra.mxu0 0.0
    %624 = vmatprep.subr.mxu0 0.0
    %625 = vmatpush1.msra.mxu0 0.0
    %626 = vmatprep.subr.mxu0 0.0
    %627 = vmatpush1.msra.mxu0 0.0
    %628 = vmatprep.subr.mxu0 0.0
    %629 = vmatpush1.msra.mxu0 0.0
    %630 = vmatprep.subr.mxu0 0.0
    %631 = vmatpush1.msra.mxu0 0.0
    %632 = vmatprep.subr.mxu0 0.0
    %633 = vmatpush1.msra.mxu0 0.0
    %634 = vmatprep.subr.mxu0 0.0
    %635 = vmatpush1.msra.mxu0 0.0
    %636 = vmatprep.subr.mxu0 0.0
    %637 = vmatpush1.msra.mxu0 0.0
    %638 = vmatprep.subr.mxu0 0.0
    %639 = vmatpush1.msra.mxu0 0.0
    %640 = vmatprep.subr.mxu0 0.0
    %641 = vmatpush1.msra.mxu0 0.0
    %642 = vmatprep.subr.mxu0 0.0
    %643 = vmatpush1.msra.mxu0 0.0
    %644 = vmatprep.subr.mxu0 0.0
    %645 = vmatpush1.msra.mxu0 0.0
    %646 = vmatprep.subr.mxu0 0.0
    %647 = vmatpush1.msra.mxu0 0.0
    %648 = vmatprep.subr.mxu0 0.0
    %649 = vmatpush1.msra.mxu0 0.0
    %650 = vmatprep.mubr.f32.mxu0 0.0
    %651 = vmatmul.mubr.f32.gmra.mrb[0].mxu0 %v553
    %v652 = vpop.f32.mrb[0].mxu0
    %v653 = vadd.f32 0.0, %v652
    %v654 = vpop.f32.mrb[0].mxu0
    %v655 = vadd.f32 0.0, %v654
    %656 = vdwg.mxu0
    %s657 = scalar_lea.vmem %s7, 4
    %v658 = vld [vmem:[%s657] ss:$8 sm:$0x3]
    %s659 = scalar_lea.vmem %s7, 17
    %v660 = vld [vmem:[%s659] ss:$8 sm:$0x3]
    %v661 = vrot.slane %v653, 4
    %v662 = vadd.f32 %v653, %v661
    %v663 = vrot.slane %v662, 2
    %v664 = vadd.f32 %v662, %v663
    %v665 = vrot.slane %v664, 1
    %v666 = vadd.f32 %v664, %v665
    %v667 = vrot.slane %v655, 4
    %v668 = vadd.f32 %v655, %v667
    %v669 = vrot.slane %v668, 2
    %v670 = vadd.f32 %v668, %v669
    %v671 = vrot.slane %v670, 1
    %v672 = vadd.f32 %v670, %v671
    %v673 = vmul.f32 %v666, %v207
    %v674 = vmul.f32 %v672, %v207
    %v675 = vsub.f32 %v653, %v673
    %v676 = vsub.f32 %v655, %v674
    %v677 = vmul.f32 %v675, %v675
    %v678 = vmul.f32 %v676, %v676
    %v679 = vrot.slane %v677, 4
    %v680 = vadd.f32 %v677, %v679
    %v681 = vrot.slane %v680, 2
    %v682 = vadd.f32 %v680, %v681
    %v683 = vrot.slane %v682, 1
    %v684 = vadd.f32 %v682, %v683
    %v685 = vrot.slane %v678, 4
    %v686 = vadd.f32 %v678, %v685
    %v687 = vrot.slane %v686, 2
    %v688 = vadd.f32 %v686, %v687
    %v689 = vrot.slane %v688, 1
    %v690 = vadd.f32 %v688, %v689
    %v691 = vmul.f32 %v684, %v207
    %v692 = vmul.f32 %v690, %v207
    %v693 = vadd.f32 %v691, 1e-05
    %v694 = vadd.f32 %v692, 1e-05
    %v695 = vrsqrt.pop %v693
    %v696 = vrsqrt.pop %v694
    %v699 = vcombine.low %v695, %v696
    %v701 = vunpack.c.l.s4 1966171168
    %v702 = vunpack.c.0.s8 %v701
    %v703 = vlaneseq
    %v704 = vshrl.u32 %v703, 7
    %v705 = vsub.s32 %v702, %v704
    %v706 = vrot.slane %v699, %v705
    %v708 = vunpack.c.l.s4 1966171168
    %v709 = vunpack.c.0.s8 %v708
    %v710 = vlaneseq
    %v711 = vshrl.u32 %v710, 7
    %v712 = vsub.s32 %v709, %v711
    %v713 = vrot.slane %v706, %v712
    %v715 = vmul.f32 %v658, %v713
    %v717 = vlaneseq
    %v718 = vshrl.u32 %v717, 7
    %v719 = vsub.s32 0, %v718
    %v720 = vrot.slane %v715, %v719
    %v721 = vlaneseq
    %v722 = vshrl.u32 %v721, 7
    %v723 = vsub.s32 1, %v722
    %v724 = vrot.slane %v715, %v723
    %v727 = vmul.f32 %v675, %v720
    %v728 = vmul.f32 %v676, %v724
    %v730 = vlaneseq
    %v731 = vshrl.u32 %v730, 7
    %v732 = vsub.s32 0, %v731
    %v733 = vrot.slane %v660, %v732
    %v734 = vlaneseq
    %v735 = vshrl.u32 %v734, 7
    %v736 = vsub.s32 1, %v735
    %v737 = vrot.slane %v660, %v736
    %v740 = vadd.f32 %v727, %v733
    %v741 = vadd.f32 %v728, %v737
    %v742 = vmax.f32 %v740, 0.0
    %v743 = vmax.f32 %v741, 0.0
    %v744 = vld [vmem:[#allocation11] sm:$0xff]
    %v745 = vld [vmem:[#allocation11 + $0x8] sm:$0xff]
    %v746 = vld [vmem:[#allocation11 + $0x10] sm:$0xff]
    %v747 = vld [vmem:[#allocation11 + $0x18] sm:$0xff]
    %v748 = vld [vmem:[#allocation11 + $0x20] sm:$0xff]
    %v749 = vld [vmem:[#allocation11 + $0x28] sm:$0xff]
    %v750 = vld [vmem:[#allocation11 + $0x30] sm:$0xff]
    %v751 = vld [vmem:[#allocation11 + $0x38] sm:$0xff]
    %v752 = vld [vmem:[#allocation11 + $0x40] sm:$0xff]
    %v753 = vld [vmem:[#allocation11 + $0x48] sm:$0xff]
    %v754 = vld [vmem:[#allocation11 + $0x50] sm:$0xff]
    %v755 = vld [vmem:[#allocation11 + $0x58] sm:$0xff]
    %v756 = vld [vmem:[#allocation11 + $0x60] sm:$0xff]
    %v757 = vld [vmem:[#allocation11 + $0x68] sm:$0xff]
    %v758 = vld [vmem:[#allocation11 + $0x70] sm:$0xff]
    %v759 = vld [vmem:[#allocation11 + $0x78] sm:$0xff]
    %v760 = vld [vmem:[#allocation11 + $0x80] sm:$0xff]
    %v761 = vld [vmem:[#allocation11 + $0x88] sm:$0xff]
    %v762 = vld [vmem:[#allocation11 + $0x90] sm:$0xff]
    %v763 = vld [vmem:[#allocation11 + $0x98] sm:$0xff]
    %v764 = vld [vmem:[#allocation11 + $0xa0] sm:$0xff]
    %v765 = vld [vmem:[#allocation11 + $0xa8] sm:$0xff]
    %v766 = vld [vmem:[#allocation11 + $0xb0] sm:$0xff]
    %v767 = vld [vmem:[#allocation11 + $0xb8] sm:$0xff]
    %v768 = vld [vmem:[#allocation11 + $0xc0] sm:$0xff]
    %v769 = vld [vmem:[#allocation11 + $0xc8] sm:$0xff]
    %v770 = vld [vmem:[#allocation11 + $0xd0] sm:$0xff]
    %v771 = vld [vmem:[#allocation11 + $0xd8] sm:$0xff]
    %v772 = vld [vmem:[#allocation11 + $0xe0] sm:$0xff]
    %v773 = vld [vmem:[#allocation11 + $0xe8] sm:$0xff]
    %v774 = vld [vmem:[#allocation11 + $0xf0] sm:$0xff]
    %v775 = vld [vmem:[#allocation11 + $0xf8] sm:$0xff]
    %v776 = vld [vmem:[%s7 + $0x12] ss:$0 sm:$0xff]
    %777 = vmatprep.subr.mxu0 0.0
    %778 = vmatpush1.msra.mxu0 %v744
    %779 = vmatprep.subr.mxu0 0.0
    %780 = vmatpush1.msra.mxu0 %v745
    %781 = vmatprep.subr.mxu0 0.0
    %782 = vmatpush1.msra.mxu0 %v746
    %783 = vmatprep.subr.mxu0 0.0
    %784 = vmatpush1.msra.mxu0 %v747
    %785 = vmatprep.subr.mxu0 0.0
    %786 = vmatpush1.msra.mxu0 %v748
    %787 = vmatprep.subr.mxu0 0.0
    %788 = vmatpush1.msra.mxu0 %v749
    %789 = vmatprep.subr.mxu0 0.0
    %790 = vmatpush1.msra.mxu0 %v750
    %791 = vmatprep.subr.mxu0 0.0
    %792 = vmatpush1.msra.mxu0 %v751
    %793 = vmatprep.subr.mxu0 0.0
    %794 = vmatpush1.msra.mxu0 %v752
    %795 = vmatprep.subr.mxu0 0.0
    %796 = vmatpush1.msra.mxu0 %v753
    %797 = vmatprep.subr.mxu0 0.0
    %798 = vmatpush1.msra.mxu0 %v754
    %799 = vmatprep.subr.mxu0 0.0
    %800 = vmatpush1.msra.mxu0 %v755
    %801 = vmatprep.subr.mxu0 0.0
    %802 = vmatpush1.msra.mxu0 %v756
    %803 = vmatprep.subr.mxu0 0.0
    %804 = vmatpush1.msra.mxu0 %v757
    %805 = vmatprep.subr.mxu0 0.0
    %806 = vmatpush1.msra.mxu0 %v758
    %807 = vmatprep.subr.mxu0 0.0
    %808 = vmatpush1.msra.mxu0 %v759
    %809 = vmatprep.subr.mxu0 0.0
    %810 = vmatpush1.msra.mxu0 %v760
    %811 = vmatprep.subr.mxu0 0.0
    %812 = vmatpush1.msra.mxu0 %v761
    %813 = vmatprep.subr.mxu0 0.0
    %814 = vmatpush1.msra.mxu0 %v762
    %815 = vmatprep.subr.mxu0 0.0
    %816 = vmatpush1.msra.mxu0 %v763
    %817 = vmatprep.subr.mxu0 0.0
    %818 = vmatpush1.msra.mxu0 %v764
    %819 = vmatprep.subr.mxu0 0.0
    %820 = vmatpush1.msra.mxu0 %v765
    %821 = vmatprep.subr.mxu0 0.0
    %822 = vmatpush1.msra.mxu0 %v766
    %823 = vmatprep.subr.mxu0 0.0
    %824 = vmatpush1.msra.mxu0 %v767
    %825 = vmatprep.subr.mxu0 0.0
    %826 = vmatpush1.msra.mxu0 %v768
    %827 = vmatprep.subr.mxu0 0.0
    %828 = vmatpush1.msra.mxu0 %v769
    %829 = vmatprep.subr.mxu0 0.0
    %830 = vmatpush1.msra.mxu0 %v770
    %831 = vmatprep.subr.mxu0 0.0
    %832 = vmatpush1.msra.mxu0 %v771
    %833 = vmatprep.subr.mxu0 0.0
    %834 = vmatpush1.msra.mxu0 %v772
    %835 = vmatprep.subr.mxu0 0.0
    %836 = vmatpush1.msra.mxu0 %v773
    %837 = vmatprep.subr.mxu0 0.0
    %838 = vmatpush1.msra.mxu0 %v774
    %839 = vmatprep.subr.mxu0 0.0
    %840 = vmatpush1.msra.mxu0 %v775
    %841 = vmatprep.mubr.f32.mxu0 %v743
    %842 = vmatmul.mubr.f32.gmra.mrb[0].mxu0 %v742
    %v843 = vpop.f32.mrb[0].mxu0
    %v844 = vadd.f32 %v776, %v843
    %v845 = vpop.f32.mrb[0].mxu0
    %846 = vdwg.mxu0
    %847 = vst [vmem:[#allocation13] sm:$0xff] %v844
    // Predicated region
    $region58: #{decoder_forward.1} parent=1 // pred_check
      _
    $region59: #{decoder_forward.1} parent=1 // pred_check_branch
      %849 = sbr.rel (0) target = $region61
    $region60: #{decoder_forward.1} parent=1 // pred_region
      %s851 = ssub.s32 128, 128
      %852 = vsyncadd [#allocation4], %s851
      %s854 = sshll.u32 [#allocation13], 4
      %s855 = int_to_ptr.vmem [resolvable:$true] %s854
      %857 = dma.vmem_to_hbm [thread:$0]  %s855, 128, %s8, [#allocation4]
    $region61: #{decoder_forward.1} parent=1 // pred_fallthru
      _
    // Predicated region
    $region62: #{decoder_forward.1} parent=1 // pred_check
      _
    $region63: #{decoder_forward.1} parent=1 // pred_check_branch
      %859 = sbr.rel (0) target = $region65
    $region64: #{decoder_forward.1} parent=1 // pred_region
      %860 = dma.done [#allocation4], 128
    $region65: #{decoder_forward.1} parent=1 // pred_fallthru
      _
    %861 = vsyncpa [#allocation3], 1
    %862 = vsyncpa [#allocation6], 1
    %863 = vsyncpa [#allocation9], 1
    %864 = vsyncpa [#allocation12], 1
    %865 = vsyncpa [#allocation4], 1

</llo_original>
